<compile_context>
chip_gen: v7x
topology: tpu7x:2x2x1
jax: 0.10.0
libtpu: 0.0.40
codegen_flags: <defaults>
</compile_context>

<pallas_src>
import math

import jax
import jax.numpy as jnp
from jax.experimental import pallas as pl
from jax.experimental.pallas import tpu as pltpu


# ---------------------------------------------------------------------------
# Kernels
# ---------------------------------------------------------------------------

def _masked_linear_kernel_f32out(x_ref, w_ref, b_ref, o_ref):
    """f32 output: accumulate straight into the resident output block."""
    k = pl.program_id(2)

    @pl.when(k == 0)
    def _():
        # Seed with the broadcast bias: removes the separate epilogue add.
        o_ref[...] = jnp.zeros_like(o_ref) + b_ref[...]

    o_ref[...] += jnp.dot(x_ref[...], w_ref[...],
                          preferred_element_type=jnp.float32)


def _masked_linear_kernel_acc(x_ref, w_ref, b_ref, o_ref, acc_ref):
    """Non-f32 output: f32 VMEM accumulator, cast on the last K step."""
    k = pl.program_id(2)

    @pl.when(k == 0)
    def _():
        acc_ref[...] = jnp.zeros_like(acc_ref) + b_ref[...]

    acc_ref[...] += jnp.dot(x_ref[...], w_ref[...],
                            preferred_element_type=jnp.float32)

    @pl.when(k == pl.num_programs(2) - 1)
    def _():
        o_ref[...] = acc_ref[...].astype(o_ref.dtype)


# ---------------------------------------------------------------------------
# Tiling helpers
# ---------------------------------------------------------------------------

def _round_up(x, m):
    return ((x + m - 1) // m) * m


def _vmem_capacity_bytes():
    try:
        return int(pltpu.get_tpu_info().vmem_capacity_bytes)
    except Exception:
        return 64 << 20          # conservative (v7x-sized) fallback


def _choose_tiles(M, K, N, x_bytes, w_bytes, out_bytes, vmem_cap):
    big_vmem = vmem_cap >= (96 << 20)            # v5e / v6e: 128 MiB per core
    # Budget for the double-buffered working set; leave compiler headroom.
    ws_budget = (96 << 20) if big_vmem else min(44 << 20, (vmem_cap * 7) // 10)
    cap_m = 512 if big_vmem else 256
    cap_n = 2048 if big_vmem else 512
    cap_k = 2048 if big_vmem else 1024

    # tile_m: sublane multiple (16 packs bf16 rows tightly).
    if M >= cap_m:
        tile_m = cap_m
    elif M <= 8:
        tile_m = 8
    else:
        tile_m = _round_up(M, 16)

    # tile_n: lane-dense; caps are multiples of 256 (full 256x256 MXU).
    tile_n = N if N <= cap_n else cap_n

    # tile_k: prefer an exact 128-multiple divisor of K; otherwise the wrapper
    # zero-pads K to a tile_k multiple (exact: padded rows contribute 0).
    if K <= cap_k:
        tile_k = K
    else:
        tile_k = None
        t = cap_k - (cap_k % 128)
        while t >= 128:
            if K % t == 0:
                tile_k = t
                break
            t -= 128
        if tile_k is None:
            tile_k = 512

    # Shrink until the double-buffered working set fits the budget.
    def ws(tm, tn, tk):
        dbl = 2 * (tm * tk * x_bytes + tk * tn * w_bytes
                   + tn * 4 + tm * tn * out_bytes)
        return dbl + tm * tn * 4                 # + f32 accumulator / resident out

    while ws(tile_m, tile_n, tile_k) > ws_budget:
        if tile_k >= max(tile_n, 256) and tile_k % 256 == 0:
            tile_k //= 2
        elif tile_n > 256:
            tile_n = max(256, _round_up(tile_n // 2, 128))
        elif tile_m > 16:
            tile_m = max(16, _round_up(tile_m // 2, 16))
        elif tile_n > 128:
            tile_n = 128
        elif tile_k > 128 and tile_k % 256 == 0:
            tile_k //= 2
        else:
            break

    # Make sure the parallel (M, N) grid has >= 2 programs so both v7x
    # TensorCores get work (negligible extra grid-step cost on 1-TC chips).
    if pl.cdiv(M, tile_m) * pl.cdiv(N, tile_n) == 1:
        if N > 128 and tile_n > 128:
            tile_n = max(128, _round_up(pl.cdiv(N, 2), 128))
        elif M > 16 and tile_m > 16:
            tile_m = max(16, _round_up(pl.cdiv(M, 2), 16))

    return tile_m, tile_n, tile_k


# ---------------------------------------------------------------------------
# Public API
# ---------------------------------------------------------------------------

def prepare_masked_linear_params(weight, mask, bias, *, compute_dtype=jnp.bfloat16):
    """One-time weight prep (hoisted out of the forward path).

    Folds the mask into the weight, transposes to a lane-dense (K, N) RHS and
    casts to the compute dtype. Do this once at init and reuse across forward
    calls so the kernel's single weight stream is the only weight HBM traffic.
    """
    w_kn = (weight * mask).T.astype(compute_dtype)      # (K, N)
    bias2d = bias.reshape(1, -1).astype(jnp.float32)    # (1, N), kept f32
    return w_kn, bias2d


def masked_linear(x, w_kn, bias2d, *, tile_m=None, tile_n=None, tile_k=None,
                  out_dtype=None):
    """y = x @ w_kn + bias, where w_kn is the pre-masked (K, N) weight.

    x: (M, K)   w_kn: (K, N)   bias2d: (1, N)   ->   (M, N) in out_dtype
    """
    M, K = x.shape
    K2, N = w_kn.shape
    assert K == K2 and bias2d.shape == (1, N)

    out_dtype = x.dtype if out_dtype is None else out_dtype
    compute_dtype = w_kn.dtype
    if x.dtype != compute_dtype:
        x = x.astype(compute_dtype)

    x_bytes = jnp.dtype(compute_dtype).itemsize
    out_bytes = jnp.dtype(out_dtype).itemsize
    vmem_cap = _vmem_capacity_bytes()

    dm, dn, dk = _choose_tiles(M, K, N, x_bytes, x_bytes, out_bytes, vmem_cap)
    tile_m = dm if tile_m is None else tile_m
    tile_n = dn if tile_n is None else tile_n
    tile_k = dk if tile_k is None else tile_k

    # Zero-pad K to a tile_k multiple (exact: padded columns/rows contribute 0).
    # TODO(synk): fold the weight-side pad into prepare_masked_linear_params so
    # it happens once instead of per call (only triggers for large, odd K).
    padded_k = _round_up(K, tile_k)
    if padded_k != K:
        x = jnp.pad(x, ((0, 0), (0, padded_k - K)))
        w_kn = jnp.pad(w_kn, ((0, padded_k - K), (0, 0)))

    grid = (pl.cdiv(M, tile_m), pl.cdiv(N, tile_n), padded_k // tile_k)

    f32_out = jnp.dtype(out_dtype) == jnp.dtype(jnp.float32)
    kernel = _masked_linear_kernel_f32out if f32_out else _masked_linear_kernel_acc
    scratch = [] if f32_out else [pltpu.VMEM((tile_m, tile_n), jnp.float32)]

    # VMEM limit: working set + headroom, capped per generation.
    est = (2 * (tile_m * tile_k * x_bytes + tile_k * tile_n * x_bytes
                + tile_n * 4 + tile_m * tile_n * out_bytes)
           + tile_m * tile_n * 4)
    if vmem_cap >= (96 << 20):                       # v5e / v6e (128 MiB)
        vmem_limit = int(min(max(est + (8 << 20), 64 << 20), 100 << 20))
    else:                                            # v7x (64 MiB)
        vmem_limit = int(min(max(est + (8 << 20), 32 << 20), 56 << 20))

    return pl.pallas_call(
        kernel,
        out_shape=jax.ShapeDtypeStruct((M, N), out_dtype),
        grid_spec=pltpu.PrefetchScalarGridSpec(
            num_scalar_prefetch=0,
            grid=grid,
            in_specs=[
                pl.BlockSpec((tile_m, tile_k), lambda i, j, k: (i, k)),   # x tile
                pl.BlockSpec((tile_k, tile_n), lambda i, j, k: (k, j)),   # masked W^T
                pl.BlockSpec((1, tile_n), lambda i, j, k: (0, j)),        # bias row
            ],
            out_specs=pl.BlockSpec((tile_m, tile_n), lambda i, j, k: (i, j)),
            scratch_shapes=scratch,
        ),
        compiler_params=pltpu.CompilerParams(
            dimension_semantics=("parallel", "parallel", "arbitrary"),
            vmem_limit_bytes=vmem_limit,
        ),
    )(x, w_kn, bias2d)


def init_masked_linear_params(key, in_features, out_features):
    """Deterministic emulation of MaskedLinear.__init__ / reset_parameters."""
    k_mask, k_w, k_b = jax.random.split(key, 3)

    # mask given as (in_features, out_features) of {0,1}; module stores its transpose.
    mask_io = (jax.random.uniform(k_mask, (in_features, out_features)) > 0.5
               ).astype(jnp.float32)
    mask = mask_io.T                                         # (out, in)

    # kaiming_uniform_(a=sqrt(5)) on weight (out, in): bound = 1/sqrt(fan_in)
    fan_in = in_features
    w_bound = 1.0 / math.sqrt(fan_in)
    weight = jax.random.uniform(
        k_w, (out_features, in_features), minval=-w_bound, maxval=w_bound
    ).astype(jnp.float32)
    weight = weight * mask                                   # weight.data *= mask at init

    b_bound = 1.0 / math.sqrt(fan_in)
    bias = jax.random.uniform(
        k_b, (out_features,), minval=-b_bound, maxval=b_bound
    ).astype(jnp.float32)

    return weight, mask, bias


if __name__ == "__main__":
    key = jax.random.PRNGKey(0)
    batch, in_features, out_features = 8, 128, 256

    k_x, k_p = jax.random.split(key)
    x = jax.random.normal(k_x, (batch, in_features), dtype=jnp.float32)
    weight, mask, bias = init_masked_linear_params(k_p, in_features, out_features)

    # Reference in plain JAX (same math as MaskedLinearFunction.forward).
    y_ref = x @ (weight * mask).T + bias

    # Default bf16-compute path (weight prep hoisted out of the forward call).
    w_kn, b2d = prepare_masked_linear_params(weight, mask, bias)
    y_bf16 = jax.block_until_ready(masked_linear(x, w_kn, b2d))
    assert y_bf16.shape == (batch, out_features)
    assert y_bf16.dtype == x.dtype
    assert jnp.allclose(y_bf16, y_ref, atol=3e-2, rtol=3e-2)

    # Full-precision path (tight check against the reference).
    w_kn32, b2d32 = prepare_masked_linear_params(
        weight, mask, bias, compute_dtype=jnp.float32)
    y_f32 = jax.block_until_ready(masked_linear(x, w_kn32, b2d32))
    assert jnp.allclose(y_f32, y_ref, atol=1e-5, rtol=1e-5)

    print("KERNEL_OK")
</pallas_src>

<mosaic_0001>
module attributes {stable_mosaic.version = 11 : i64} {
  func.func @_masked_linear_kernel_f32out(%arg0: i32, %arg1: i32, %arg2: i32, %arg3: memref<8x128xbf16, #tpu.memory_space<vmem>>, %arg4: memref<128x128xbf16, #tpu.memory_space<vmem>>, %arg5: memref<1x128xf32, #tpu.memory_space<vmem>>, %arg6: memref<8x128xf32, #tpu.memory_space<vmem>>) attributes {dimension_semantics = [#tpu.dimension_semantics<parallel>, #tpu.dimension_semantics<parallel>, #tpu.dimension_semantics<arbitrary>], iteration_bounds = array<i64: 1, 2, 1>, scalar_prefetch = 0 : i64, scratch_operands = 0 : i64, tpu.core_type = #tpu.core_type<tc>, window_params = [{transform_indices = @transform_0, window_bounds = array<i64: 8, 128>}, {transform_indices = @transform_1, window_bounds = array<i64: 128, 128>}, {transform_indices = @transform_2, window_bounds = array<i64: 1, 128>}, {transform_indices = @transform_3, window_bounds = array<i64: 8, 128>}]} {
    %c0_i32 = arith.constant 0 : i32
    %0 = arith.cmpi eq, %arg2, %c0_i32 : i32
    %1 = arith.extui %0 : i1 to i32
    %c0_i32_0 = arith.constant 0 : i32
    %2 = arith.cmpi ne, %1, %c0_i32_0 : i32
    scf.if %2 {
      %cst_8 = arith.constant 0.000000e+00 : f32
      %9 = vector.broadcast %cst_8 : f32 to vector<8x128xf32>
      %c0_9 = arith.constant 0 : index
      %c0_10 = arith.constant 0 : index
      %10 = vector.load %arg5[%c0_9, %c0_10] : memref<1x128xf32, #tpu.memory_space<vmem>>, vector<1x128xf32>
      %11 = vector.broadcast %10 : vector<1x128xf32> to vector<8x128xf32>
      %12 = arith.addf %9, %11 : vector<8x128xf32>
      %c0_11 = arith.constant 0 : index
      %c0_12 = arith.constant 0 : index
      %13 = vector.load %arg6[%c0_11, %c0_12] : memref<8x128xf32, #tpu.memory_space<vmem>>, vector<8x128xf32>
      tpu.vector_store %arg6[%c0_11, %c0_12], %12 {strides = array<i32>} : memref<8x128xf32, #tpu.memory_space<vmem>>, vector<8x128xf32>,
    } else {
    }
    %c0 = arith.constant 0 : index
    %c0_1 = arith.constant 0 : index
    %3 = vector.load %arg6[%c0, %c0_1] : memref<8x128xf32, #tpu.memory_space<vmem>>, vector<8x128xf32>
    %c0_2 = arith.constant 0 : index
    %c0_3 = arith.constant 0 : index
    %4 = vector.load %arg3[%c0_2, %c0_3] : memref<8x128xbf16, #tpu.memory_space<vmem>>, vector<8x128xbf16>
    %c0_4 = arith.constant 0 : index
    %c0_5 = arith.constant 0 : index
    %5 = vector.load %arg4[%c0_4, %c0_5] : memref<128x128xbf16, #tpu.memory_space<vmem>>, vector<128x128xbf16>
    %cst = arith.constant dense<0.000000e+00> : vector<8x128xf32>
    %6 = tpu.matmul %4, %5, %cst {dimension_numbers = #tpu.dot_dimension_numbers<[1], [0], [0], [1], [0, 0, 1, 1], [], []>} : vector<8x128xbf16>, vector<128x128xbf16>, vector<8x128xf32> -> vector<8x128xf32>
    %7 = arith.addf %3, %6 : vector<8x128xf32>
    %c0_6 = arith.constant 0 : index
    %c0_7 = arith.constant 0 : index
    %8 = vector.load %arg6[%c0_6, %c0_7] : memref<8x128xf32, #tpu.memory_space<vmem>>, vector<8x128xf32>
    tpu.vector_store %arg6[%c0_6, %c0_7], %7 {strides = array<i32>} : memref<8x128xf32, #tpu.memory_space<vmem>>, vector<8x128xf32>,
    return
  }
  func.func @transform_0(%arg0: i32, %arg1: i32, %arg2: i32) -> (i32, i32) {
    %c0_i32 = arith.constant 0 : i32
    return %arg0, %arg2 : i32, i32
  }
  func.func @transform_1(%arg0: i32, %arg1: i32, %arg2: i32) -> (i32, i32) {
    %c0_i32 = arith.constant 0 : i32
    return %arg2, %arg1 : i32, i32
  }
  func.func @transform_2(%arg0: i32, %arg1: i32, %arg2: i32) -> (i32, i32) {
    %c0_i32 = arith.constant 0 : i32
    %c0_i32_0 = arith.constant 0 : i32
    return %c0_i32, %arg1 : i32, i32
  }
  func.func @transform_3(%arg0: i32, %arg1: i32, %arg2: i32) -> (i32, i32) {
    %c0_i32 = arith.constant 0 : i32
    return %arg0, %arg1 : i32, i32
  }
}

</mosaic_0001>

<llo_original>
// kernel: tpu_custom_call.1
$region0: #{tpu_custom_call.1}
  #allocation0 [shape = 'u32[]', space=smem, size = 0x4, offset = 0x4, fixed_abs, tag = 'smem constant byte address 0x4 - core index']
  #allocation1 [shape = 'u32[144,128]{1,0:T(1,128)}', space=vmem, size = 0x12000, scoped, tag = 'internal scratch']
  %s0 = inlined_call_operand.hbm [shape: bf16[8,128], index: 0, kind: input, shape index: {}]
  %s1 = inlined_call_operand.hbm [shape: bf16[128,256], index: 1, kind: input, shape index: {}]
  %s2 = inlined_call_operand.vmem [shape: f32[1,256], index: 2, kind: input, shape index: {}]
  %s3 = inlined_call_operand.hbm [shape: f32[8,256], index: 3, kind: output, shape index: {}]
  %s4 = sld [smem:[#allocation0]]
  $region57: #{tpu_custom_call.1} parent=0
    _
  %s6 = ssub.s32 1, %s4
  %s7 = scalar_select 0, %s6, %s4
  $region1: #{tpu_custom_call.1} parent=0
    #allocation2 [shape = 'u8[2048]{0}', space=vmem, size = 0x800, scoped, tag = 'input window, operand 0, single buffered']
    #allocation3 [shape = 's32[2]{0}', space=sflag, size = 0x8, scoped, tag = 'scoped memory for tpu_custom_call.1']
    #allocation4 [shape = 's32[2]{0}', space=sflag, size = 0x8, scoped, tag = 'scoped memory for tpu_custom_call.1']
    #allocation5 [shape = 'u8[65536]{0}', space=vmem, size = 0x10000, scoped, tag = 'input window, operand 1']
    #allocation6 [shape = 's32[2]{0}', space=sflag, size = 0x8, scoped, tag = 'scoped memory for tpu_custom_call.1']
    #allocation7 [shape = 'u8[8192]{0}', space=vmem, size = 0x2000, scoped, tag = 'output window, operand 0']
    %8 = vsyncpa [#allocation3], 0
    %9 = vsyncpa [#allocation6], 0
    %s10 = scalar_lea.sflag [#allocation6], 1
    %11 = vsyncpa %s10, 0
    %12 = vsyncpa [#allocation4], 0
    %s13 = scalar_lea.sflag [#allocation4], 1
    %14 = vsyncpa %s13, 0
    loop: start=0, step=1, limit=4
    $region2: #{tpu_custom_call.1} parent=1 // loop_pre_header
      _
    $region3: #{tpu_custom_call.1} parent=1 // loop_header
      %s16 = sphi 0, %s20
      %p17 = scmp.ge.s32.totalorder %s16, 4
      %s23 = sphi 0, %s42
      %s24 = sphi 0, %s38
      %s25 = sphi 0, %s34
      %s26 = sphi 0, %s23
      %s27 = sphi 0, %s24
      %s28 = sphi 0, %s25
      %s29 = sphi 0, %s26
      %s30 = sphi 0, %s27
      %s31 = sphi 0, %s28
      %s47 = sphi 0, %s49
      %s50 = sphi 0, %s47
      %s51 = sphi 0, %s50
      %s67 = sphi 0, %s51
      %s75 = sphi 0, %s77
      %s78 = sphi 0, %s75
      %s79 = sphi 0, %s78
      %s95 = sphi 0, %s79
      %s101 = sphi 0, %s103
      %s104 = sphi 0, %s101
      %s105 = sphi 0, %s104
      %s121 = sphi 0, %s105
      %s129 = sphi 0, %s131
      %s132 = sphi 0, %s129
      %s133 = sphi 0, %s132
      %s149 = sphi 0, %s133
    $region4: #{tpu_custom_call.1} parent=1 // loop_header_branch
      %19 = sbr.rel (%p17) target = $region8
    $region5: #{tpu_custom_call.1} parent=1 // loop_body
      %s21 = ssub.s32 %s16, 1
      %s22 = ssub.s32 %s16, 2
      %s32 = sadd.s32 1, %s25
      %p33 = scmp.ge.s32.totalorder %s32, 1
      %s34 = scalar_select %p33, 0, %s32
      %s35 = sadd.s32 1, %s24
      %s36 = scalar_select %p33, %s35, %s24
      %p37 = scmp.ge.s32.totalorder %s36, 2
      %s38 = scalar_select %p37, 0, %s36
      %s39 = sadd.s32 1, %s23
      %s40 = scalar_select %p37, %s39, %s23
      %p41 = scmp.ge.s32.totalorder %s40, 1
      %s42 = scalar_select %p41, 0, %s40
      %s43 = ssub.s32 %s23, %s42
      %s44 = ssub.s32 %s25, %s34
      %s45 = sor.u32 %s43, %s44
      %p46 = scmp.eq.s32.totalorder %s45, 0
      %s48 = sadd.s32 %s47, 1
      %s49 = scalar_select %p46, %s47, %s48
      %p52 = pneg %p46
      %p53 = scmp.eq.s32.totalorder %s16, 1
      %p54 = por %p52, %p53
      %p55 = scmp.ne.s32.totalorder %s47, %s50
      %p56 = scmp.eq.s32.totalorder %s16, 0
      %p57 = por %p55, %p56
      %p58 = scmp.ne.s32.totalorder %s47, %s50
      %p59 = scmp.eq.s32.totalorder %s21, 1
      %p60 = por %p58, %p59
      %p61 = scmp.ne.s32.totalorder %s50, %s51
      %p62 = scmp.eq.s32.totalorder %s21, 0
      %p63 = por %p61, %p62
      %p64 = scmp.ne.s32.totalorder %s50, %s51
      %p65 = scmp.eq.s32.totalorder %s22, 1
      %p66 = por %p64, %p65
      %p68 = scmp.ne.s32.totalorder %s51, %s67
      %p69 = scmp.eq.s32.totalorder %s22, 0
      %p70 = por %p68, %p69
      %s71 = ssub.s32 %s25, %s34
      %s72 = ssub.s32 %s24, %s38
      %s73 = sor.u32 %s71, %s72
      %p74 = scmp.eq.s32.totalorder %s73, 0
      %s76 = sadd.s32 %s75, 1
      %s77 = scalar_select %p74, %s75, %s76
      %p80 = pneg %p74
      %p81 = scmp.eq.s32.totalorder %s16, 1
      %p82 = por %p80, %p81
      %p83 = scmp.ne.s32.totalorder %s75, %s78
      %p84 = scmp.eq.s32.totalorder %s16, 0
      %p85 = por %p83, %p84
      %p86 = scmp.ne.s32.totalorder %s75, %s78
      %p87 = scmp.eq.s32.totalorder %s21, 1
      %p88 = por %p86, %p87
      %p89 = scmp.ne.s32.totalorder %s78, %s79
      %p90 = scmp.eq.s32.totalorder %s21, 0
      %p91 = por %p89, %p90
      %p92 = scmp.ne.s32.totalorder %s78, %s79
      %p93 = scmp.eq.s32.totalorder %s22, 1
      %p94 = por %p92, %p93
      %p96 = scmp.ne.s32.totalorder %s79, %s95
      %p97 = scmp.eq.s32.totalorder %s22, 0
      %p98 = por %p96, %p97
      %s99 = ssub.s32 %s24, %s38
      %p100 = scmp.eq.s32.totalorder %s99, 0
      %s102 = sadd.s32 %s101, 1
      %s103 = scalar_select %p100, %s101, %s102
      %p106 = pneg %p100
      %p107 = scmp.eq.s32.totalorder %s16, 1
      %p108 = por %p106, %p107
      %p109 = scmp.ne.s32.totalorder %s101, %s104
      %p110 = scmp.eq.s32.totalorder %s16, 0
      %p111 = por %p109, %p110
      %p112 = scmp.ne.s32.totalorder %s101, %s104
      %p113 = scmp.eq.s32.totalorder %s21, 1
      %p114 = por %p112, %p113
      %p115 = scmp.ne.s32.totalorder %s104, %s105
      %p116 = scmp.eq.s32.totalorder %s21, 0
      %p117 = por %p115, %p116
      %p118 = scmp.ne.s32.totalorder %s104, %s105
      %p119 = scmp.eq.s32.totalorder %s22, 1
      %p120 = por %p118, %p119
      %p122 = scmp.ne.s32.totalorder %s105, %s121
      %p123 = scmp.eq.s32.totalorder %s22, 0
      %p124 = por %p122, %p123
      %s125 = ssub.s32 %s23, %s42
      %s126 = ssub.s32 %s24, %s38
      %s127 = sor.u32 %s125, %s126
      %p128 = scmp.eq.s32.totalorder %s127, 0
      %s130 = sadd.s32 %s129, 1
      %s131 = scalar_select %p128, %s129, %s130
      %p134 = pneg %p128
      %p135 = scmp.eq.s32.totalorder %s16, 1
      %p136 = por %p134, %p135
      %p137 = scmp.ne.s32.totalorder %s129, %s132
      %p138 = scmp.eq.s32.totalorder %s16, 0
      %p139 = por %p137, %p138
      %p140 = scmp.ne.s32.totalorder %s129, %s132
      %p141 = scmp.eq.s32.totalorder %s21, 1
      %p142 = por %p140, %p141
      %p143 = scmp.ne.s32.totalorder %s132, %s133
      %p144 = scmp.eq.s32.totalorder %s21, 0
      %p145 = por %p143, %p144
      %p146 = scmp.ne.s32.totalorder %s132, %s133
      %p147 = scmp.eq.s32.totalorder %s22, 1
      %p148 = por %p146, %p147
      %p150 = scmp.ne.s32.totalorder %s133, %s149
      %p151 = scmp.eq.s32.totalorder %s22, 0
      %p152 = por %p150, %p151
      %p153 = scmp.le.s32.totalorder 1, %s16
      %p154 = scmp.lt.s32.totalorder %s16, 3
      %p155 = pnand %p153, %p154
      %p156 = pneg %p155
      // Predicated region
      $region9: #{tpu_custom_call.1} parent=5 // pred_check
        _
      $region10: #{tpu_custom_call.1} parent=5 // pred_check_branch
        %158 = sbr.rel (%p155) target = $region12
      $region11: #{tpu_custom_call.1} parent=5 // pred_region
        %s159 = ssub.s32 %s16, 1
        // Predicated region
        $region13: #{tpu_custom_call.1} parent=11 // pred_check
          %p160 = pneg %p63
        $region14: #{tpu_custom_call.1} parent=11 // pred_check_branch
          %162 = sbr.rel (%p160) target = $region16
        $region15: #{tpu_custom_call.1} parent=11 // pred_region
          %s164 = ssub.s32 64, 64
          %165 = vsyncadd [#allocation3], %s164
          %s166 = sadd.s32 %s28, %s26
          %s167 = smul.addr %s166, 64
          %s168 = scalar_lea.hbm %s0, %s167
          %s170 = sshll.u32 [#allocation2], 4
          %s171 = int_to_ptr.vmem [resolvable:$true] %s170
          %173 = dma.hbm_to_vmem [thread:$0]  %s168, 64, %s171, [#allocation3]
        $region16: #{tpu_custom_call.1} parent=11 // pred_fallthru
          _
      $region12: #{tpu_custom_call.1} parent=5 // pred_fallthru
        _
      %p174 = scmp.lt.s32.totalorder %s16, 2
      // Predicated region
      $region17: #{tpu_custom_call.1} parent=5 // pred_check
        %p175 = pneg %p174
      $region18: #{tpu_custom_call.1} parent=5 // pred_check_branch
        %177 = sbr.rel (%p175) target = $region20
      $region19: #{tpu_custom_call.1} parent=5 // pred_region
        // Predicated region
        $region21: #{tpu_custom_call.1} parent=19 // pred_check
          %p178 = pneg %p85
        $region22: #{tpu_custom_call.1} parent=19 // pred_check_branch
          %180 = sbr.rel (%p178) target = $region24
        $region23: #{tpu_custom_call.1} parent=19 // pred_region
          %s181 = sand.u32 %s75, 1
          %s182 = scalar_lea.sflag [#allocation6], %s181
          %s183 = sand.u32 %s75, 1
          %s184 = smul.addr %s183, 64
          %s185 = scalar_lea.vmem [#allocation5], %s184
          %s186 = smul.u32 16, %s25
          %s188 = ssub.s32 1024, 1024
          %189 = vsyncadd %s182, %s188
          %s190 = smul.addr %s186, 2
          %s191 = sadd.s32 %s24, %s190
          %s192 = smul.addr %s191, 64
          %s193 = scalar_lea.hbm %s1, %s192
          %s194 = sshll.u32 %s185, 4
          %s195 = int_to_ptr.vmem [resolvable:$true] %s194
          %200 = dma.hbm_to_vmem [thread:$0]  %s193, 1024, %s195, %s182, 128, 64, 4
        $region24: #{tpu_custom_call.1} parent=19 // pred_fallthru
          _
        // Predicated region
        $region25: #{tpu_custom_call.1} parent=19 // pred_check
          %p201 = pneg %p111
        $region26: #{tpu_custom_call.1} parent=19 // pred_check_branch
          %203 = sbr.rel (%p201) target = $region28
        $region27: #{tpu_custom_call.1} parent=19 // pred_region
          %p204 = scmp.lt.s32.totalorder %s24, 1
          %s205 = scalar_select %p204, %s24, 1
          %s206 = scalar_lea.vmem %s2, %s205
        $region28: #{tpu_custom_call.1} parent=19 // pred_fallthru
          _
      $region20: #{tpu_custom_call.1} parent=5 // pred_fallthru
        _
      %p207 = scmp.le.s32.totalorder 1, %s16
      %p208 = scmp.lt.s32.totalorder %s16, 3
      %p209 = pnand %p207, %p208
      %p210 = pneg %p209
      // Predicated region
      $region29: #{tpu_custom_call.1} parent=5 // pred_check
        _
      $region30: #{tpu_custom_call.1} parent=5 // pred_check_branch
        %212 = sbr.rel (%p209) target = $region32
      $region31: #{tpu_custom_call.1} parent=5 // pred_region
        %s213 = ssub.s32 %s16, 1
        // Predicated region
        $region33: #{tpu_custom_call.1} parent=31 // pred_check
          %p214 = pneg %p63
        $region34: #{tpu_custom_call.1} parent=31 // pred_check_branch
          %216 = sbr.rel (%p214) target = $region36
        $region35: #{tpu_custom_call.1} parent=31 // pred_region
          %217 = dma.done [#allocation3], 64
        $region36: #{tpu_custom_call.1} parent=31 // pred_fallthru
          _
        %s218 = sand.u32 %s78, 1
        %s219 = scalar_lea.sflag [#allocation6], %s218
        %s220 = sand.u32 %s78, 1
        %s221 = smul.addr %s220, 64
        %s222 = scalar_lea.vmem [#allocation5], %s221
        // Predicated region
        $region37: #{tpu_custom_call.1} parent=31 // pred_check
          %p223 = pneg %p91
        $region38: #{tpu_custom_call.1} parent=31 // pred_check_branch
          %225 = sbr.rel (%p223) target = $region40
        $region39: #{tpu_custom_call.1} parent=31 // pred_region
          %226 = dma.done %s219, 1024
        $region40: #{tpu_custom_call.1} parent=31 // pred_fallthru
          _
        %p227 = pneg %p63
        %p228 = pneg %p60
        %s229 = sand.u32 %s78, 1
        %s230 = scalar_lea.sflag [#allocation6], %s229
        %s231 = sand.u32 %s78, 1
        %s232 = smul.addr %s231, 64
        %s233 = scalar_lea.vmem [#allocation5], %s232
        %p234 = pneg %p91
        %p235 = pneg %p88
        %p236 = scmp.lt.s32.totalorder %s27, 1
        %s237 = scalar_select %p236, %s27, 1
        %s238 = scalar_lea.vmem %s2, %s237
        %p239 = pneg %p117
        %p240 = pneg %p114
        %p241 = pneg %p145
        %p242 = pneg %p142
        %s243 = sand.u32 %s132, 1
        %s244 = scalar_lea.sflag [#allocation4], %s243
        %s245 = sand.u32 %s132, 1
        %s246 = smul.addr %s245, 8
        %s247 = scalar_lea.vmem [#allocation7], %s246
        %s248 = smul.u32 16, %s28
        %p249 = scmp.lt.s32.totalorder %s27, 1
        %s250 = scalar_select %p249, %s27, 1
        %s251 = scalar_lea.vmem %s2, %s250
        %p253 = scmp.eq.s32.totalorder %s28, 0
        // Predicated region
        $region41: #{tpu_custom_call.1} parent=31 // pred_check
          %p254 = pneg %p253
        $region42: #{tpu_custom_call.1} parent=31 // pred_check_branch
          %256 = sbr.rel (%p254) target = $region44
        $region43: #{tpu_custom_call.1} parent=31 // pred_region
          %v257 = vld [vmem:[%s251] sm:$0x1]
          %v259 = vlaneseq
          %v260 = vshrl.u32 %v259, 7
          %v261 = vsub.s32 0, %v260
          %v262 = vrot.slane %v257, %v261
          %v264 = vadd.f32 %v262, 0.0
          %265 = vst [vmem:[%s247] sm:$0xff] %v264
        $region44: #{tpu_custom_call.1} parent=31 // pred_fallthru
          _
        %v266 = vld [vmem:[%s247] sm:$0xff]
        %v267 = vld [vmem:[#allocation2] sm:$0xf]
        %v268 = vld [vmem:[%s222] sm:$0xf]
        %v269 = vld [vmem:[%s222 + $0x4] sm:$0xf]
        %v270 = vld [vmem:[%s222 + $0x8] sm:$0xf]
        %v271 = vld [vmem:[%s222 + $0xc] sm:$0xf]
        %v272 = vld [vmem:[%s222 + $0x10] sm:$0xf]
        %v273 = vld [vmem:[%s222 + $0x14] sm:$0xf]
        %v274 = vld [vmem:[%s222 + $0x18] sm:$0xf]
        %v275 = vld [vmem:[%s222 + $0x1c] sm:$0xf]
        %v276 = vld [vmem:[%s222 + $0x20] sm:$0xf]
        %v277 = vld [vmem:[%s222 + $0x24] sm:$0xf]
        %v278 = vld [vmem:[%s222 + $0x28] sm:$0xf]
        %v279 = vld [vmem:[%s222 + $0x2c] sm:$0xf]
        %v280 = vld [vmem:[%s222 + $0x30] sm:$0xf]
        %v281 = vld [vmem:[%s222 + $0x34] sm:$0xf]
        %v282 = vld [vmem:[%s222 + $0x38] sm:$0xf]
        %v283 = vld [vmem:[%s222 + $0x3c] sm:$0xf]
        %v300 = vunpack.c.l.b16 %v268
        %v301 = vunpack.c.l.b16 %v269
        %v302 = vunpack.c.l.b16 %v270
        %v303 = vunpack.c.l.b16 %v271
        %v304 = vunpack.c.l.b16 %v272
        %v305 = vunpack.c.l.b16 %v273
        %v306 = vunpack.c.l.b16 %v274
        %v307 = vunpack.c.l.b16 %v275
        %v308 = vunpack.c.l.b16 %v276
        %v309 = vunpack.c.l.b16 %v277
        %v310 = vunpack.c.l.b16 %v278
        %v311 = vunpack.c.l.b16 %v279
        %v312 = vunpack.c.l.b16 %v280
        %v313 = vunpack.c.l.b16 %v281
        %v314 = vunpack.c.l.b16 %v282
        %v315 = vunpack.c.l.b16 %v283
        %v316 = vpack.c.b16 %v301, %v300
        %v317 = vpack.c.b16 %v303, %v302
        %v318 = vpack.c.b16 %v305, %v304
        %v319 = vpack.c.b16 %v307, %v306
        %v320 = vpack.c.b16 %v309, %v308
        %v321 = vpack.c.b16 %v311, %v310
        %v322 = vpack.c.b16 %v313, %v312
        %v323 = vpack.c.b16 %v315, %v314
        %332 = vmatprep.subr.bf16.mxu0 0
        %333 = vmatpush1.bf16.msra.mxu0 %v316
        %334 = vmatprep.subr.bf16.mxu0 0
        %335 = vmatpush1.bf16.msra.mxu0 %v317
        %336 = vmatprep.subr.bf16.mxu0 0
        %337 = vmatpush1.bf16.msra.mxu0 %v318
        %338 = vmatprep.subr.bf16.mxu0 0
        %339 = vmatpush1.bf16.msra.mxu0 %v319
        %340 = vmatprep.subr.bf16.mxu0 0
        %341 = vmatpush1.bf16.msra.mxu0 %v320
        %342 = vmatprep.subr.bf16.mxu0 0
        %343 = vmatpush1.bf16.msra.mxu0 %v321
        %344 = vmatprep.subr.bf16.mxu0 0
        %345 = vmatpush1.bf16.msra.mxu0 %v322
        %346 = vmatprep.subr.bf16.mxu0 0
        %347 = vmatpush1.bf16.msra.mxu0 %v323
        %348 = vmatprep.subr.bf16.mxu0 0
        %349 = vmatpush1.bf16.msra.mxu0 0
        %350 = vmatprep.subr.bf16.mxu0 0
        %351 = vmatpush1.bf16.msra.mxu0 0
        %352 = vmatprep.subr.bf16.mxu0 0
        %353 = vmatpush1.bf16.msra.mxu0 0
        %354 = vmatprep.subr.bf16.mxu0 0
        %355 = vmatpush1.bf16.msra.mxu0 0
        %356 = vmatprep.subr.bf16.mxu0 0
        %357 = vmatpush1.bf16.msra.mxu0 0
        %358 = vmatprep.subr.bf16.mxu0 0
        %359 = vmatpush1.bf16.msra.mxu0 0
        %360 = vmatprep.subr.bf16.mxu0 0
        %361 = vmatpush1.bf16.msra.mxu0 0
        %362 = vmatprep.subr.bf16.mxu0 0
        %363 = vmatpush1.bf16.msra.mxu0 0
        %364 = vmatprep.mubr.bf16.mxu0 0
        %365 = vmatmul.mubr.bf16.gmra.mrb[0].mxu0 %v267
        %v366 = vpop.f32.mrb[0].mxu0
        %v367 = vadd.f32 0.0, %v366
        %v368 = vpop.f32.mrb[0].mxu0
        %v369 = vpop.f32.mrb[0].mxu0
        %v370 = vpop.f32.mrb[0].mxu0
        %371 = vdwg.mxu0
        %v372 = vadd.f32 %v266, %v367
        %373 = vst [vmem:[%s247] sm:$0xff] %v372
        %s374 = sand.u32 %s132, 1
        %s375 = scalar_lea.sflag [#allocation4], %s374
        %s376 = sand.u32 %s132, 1
        %s377 = smul.addr %s376, 8
        %s378 = scalar_lea.vmem [#allocation7], %s377
        // Predicated region
        $region45: #{tpu_custom_call.1} parent=31 // pred_check
          %p379 = pneg %p142
        $region46: #{tpu_custom_call.1} parent=31 // pred_check_branch
          %381 = sbr.rel (%p379) target = $region48
        $region47: #{tpu_custom_call.1} parent=31 // pred_region
          %s383 = ssub.s32 128, 128
          %384 = vsyncadd %s375, %s383
          %s385 = smul.addr %s26, 2
          %s386 = sadd.s32 %s27, %s385
          %s387 = smul.addr %s386, 128
          %s388 = scalar_lea.hbm %s3, %s387
          %s390 = sshll.u32 %s378, 4
          %s391 = int_to_ptr.vmem [resolvable:$true] %s390
          %393 = dma.vmem_to_hbm [thread:$0]  %s391, 128, %s388, %s375
        $region48: #{tpu_custom_call.1} parent=31 // pred_fallthru
          _
      $region32: #{tpu_custom_call.1} parent=5 // pred_fallthru
        _
      %p394 = scmp.le.s32.totalorder 2, %s16
      // Predicated region
      $region49: #{tpu_custom_call.1} parent=5 // pred_check
        %p395 = pneg %p394
      $region50: #{tpu_custom_call.1} parent=5 // pred_check_branch
        %397 = sbr.rel (%p395) target = $region52
      $region51: #{tpu_custom_call.1} parent=5 // pred_region
        %s398 = ssub.s32 %s16, 2
        // Predicated region
        $region53: #{tpu_custom_call.1} parent=51 // pred_check
          %p399 = pneg %p148
        $region54: #{tpu_custom_call.1} parent=51 // pred_check_branch
          %401 = sbr.rel (%p399) target = $region56
        $region55: #{tpu_custom_call.1} parent=51 // pred_region
          %s402 = sand.u32 %s133, 1
          %s403 = scalar_lea.sflag [#allocation4], %s402
          %s404 = sand.u32 %s133, 1
          %s405 = smul.addr %s404, 8
          %s406 = scalar_lea.vmem [#allocation7], %s405
          %407 = dma.done %s403, 128
        $region56: #{tpu_custom_call.1} parent=51 // pred_fallthru
          _
      $region52: #{tpu_custom_call.1} parent=5 // pred_fallthru
        _
    $region6: #{tpu_custom_call.1} parent=1 // loop_footer
      %s20 = sadd.s32 1, %s16
    $region7: #{tpu_custom_call.1} parent=1 // loop_footer_branch
      %15 = sbr.rel target = $region3
    $region8: #{tpu_custom_call.1} parent=1 // loop_exit
      _
    %408 = vsyncpa [#allocation3], 1
    %s409 = scalar_lea.sflag [#allocation3], 1
    %410 = vsyncpa %s409, 1
    %411 = vsyncpa [#allocation6], 1
    %s412 = scalar_lea.sflag [#allocation6], 1
    %413 = vsyncpa %s412, 1
    %414 = vsyncpa [#allocation4], 1
    %s415 = scalar_lea.sflag [#allocation4], 1
    %416 = vsyncpa %s415, 1

</llo_original>
